<compile_context>
chip_gen: v5e
topology: v5e:2x2
jax: 0.10.0
libtpu: 0.0.40
codegen_flags: <defaults>
</compile_context>

<pallas_src>
import numpy as np
import jax
import jax.numpy as jnp
from jax import lax
from jax.experimental import pallas as pl
from jax.experimental.pallas import tpu as pltpu

EMBED_DIM = 32     # logical joint embedding dim (BioViL uses 128; small for test)
E_PAD = 128        # lane-dense padded embedding dim (multiple of 128)
TEXT_HIDDEN = 32   # synthetic text hidden size
VOCAB = 64         # synthetic vocab
_EPS = 1e-12       # F.normalize-style epsilon (guards zero embedding rows)

_VMEM = pl.BlockSpec(memory_space=pltpu.MemorySpace.VMEM)
_SMEM = pl.BlockSpec(memory_space=pltpu.MemorySpace.SMEM)


# ------------------------------ shared helpers -------------------------------

def _l2_normalize(x):
    # NOTE: x * rsqrt(sum(x^2)+eps); differs from torch F.normalize only for
    # near-zero rows (documented correctness concern).
    return x * lax.rsqrt(jnp.sum(x * x, axis=-1, keepdims=True) + _EPS)


def _pad_embed_cols(a):
    """Zero-pad last dim to E_PAD so projections / Gram K are lane-dense."""
    pad = E_PAD - a.shape[-1]
    return a if pad == 0 else jnp.pad(a, ((0, 0), (0, pad)))


def _fold_img_pool_into_proj(w_img, hw):
    """mean-pool-over-HW then project == x_flat @ repeat(w_img / HW, HW)."""
    # TODO(synk): only valid for the synthetic avg-pool encoder; a real conv
    # backbone would instead be tiled over NI/HW with an accumulator grid.
    return jnp.repeat(w_img / float(hw), hw, axis=0)          # [C*HW, E]


# ------------------------------ fused kernel ---------------------------------

def _medclip_fused_call(logit_scale, x_img, w_img_full, b_img, tok, mask,
                        w_txt, b_txt):
    """One pallas_call: encode all image views + text, normalize, Gram logits."""
    n_img = x_img.shape[0]            # total stacked image rows (sum of views)
    n_txt = tok.shape[0]
    n_tot = n_img + n_txt
    e_pad = w_img_full.shape[1]       # 128 (lane-dense)
    row_pad = max(8, -(-n_tot // 8) * 8)           # sublane-aligned Gram rows
    lane_pad = max(128, -(-n_tot // 128) * 128)    # lane-dense Gram cols

    def kernel(scale_ref, xi_ref, wi_ref, bi_ref, tok_ref, m_ref, wt_ref,
               bt_ref, gram_ref):
        bf16 = jnp.bfloat16

        # --- image encoder: avg-pool folded into the projection weight ->
        #     ONE bf16 MXU matmul (K = C*HW mult of 128, N = 128), f32 accum.
        img_emb = jnp.dot(xi_ref[...].astype(bf16), wi_ref[...].astype(bf16),
                          preferred_element_type=jnp.float32) + bi_ref[...]

        # --- text encoder: masked mean pool as a batched bf16 MXU matmul
        #     ((m/denom)[:,None,:] @ tok), then lane-dense bf16 projection.
        t = tok_ref[...]                                       # [Bt, S, H]
        m = m_ref[...]                                         # [Bt, S]
        denom = jnp.maximum(jnp.sum(m, axis=1, keepdims=True), 1.0)
        w = (m / denom)[:, None, :]                            # [Bt, 1, S]
        pooled_t = jnp.einsum(
            'bqs,bsh->bqh', w.astype(bf16), t.astype(bf16),
            preferred_element_type=jnp.float32)[:, 0, :]       # [Bt, H]
        txt_emb = jnp.dot(pooled_t.astype(bf16), wt_ref[...].astype(bf16),
                          preferred_element_type=jnp.float32) + bt_ref[...]

        # --- L2-normalize ONCE per embedding, in f32 (rsqrt -> EUP).
        img_n = _l2_normalize(img_emb)                         # [NI, E_PAD]
        txt_n = _l2_normalize(txt_emb)                         # [Bt, E_PAD]

        # --- assemble the padded slabs in registers (no VMEM scratch, no
        #     masked partial stores, no reload before the MXU op).
        rows = [img_n, txt_n]
        if row_pad > n_tot:
            rows.append(jnp.zeros((row_pad - n_tot, e_pad), jnp.float32))
        z_rows = jnp.concatenate(rows, axis=0)                 # [row_pad, E]
        cols = [z_rows]
        if lane_pad > row_pad:
            cols.append(jnp.zeros((lane_pad - row_pad, e_pad), jnp.float32))
        z_cols = jnp.concatenate(cols, axis=0)                 # [lane_pad, E]

        # --- Gram of every (row, col) pair; contraction over the shared last
        #     dim (no transpose materialized), bf16 operands / f32 accum;
        #     exp(logit_scale) applied once to the single [8,128] result;
        #     unmasked lane-dense store (last dim multiple of 128).
        # (No CLIP-style exp<=100 clamp: reference MedCLIP does not clamp.)
        scale = jnp.exp(scale_ref[0])
        gram_ref[...] = scale * lax.dot_general(
            z_rows.astype(bf16), z_cols.astype(bf16),
            (((1,), (1,)), ((), ())),
            preferred_element_type=jnp.float32)

    # TODO(synk): at real BioViL/CXR-BERT sizes: grid over image rows with
    # pl.BlockSpec tiles + accumulator epilogue ('parallel' semantics to use
    # v7x's two TensorCores, smaller tiles / explicit vmem_limit_bytes on
    # v5e/v7x), compute only the Gram blocks the wrapper consumes, and move
    # the token-embedding gather in-kernel via PrefetchScalarGridSpec.
    return pl.pallas_call(
        kernel,
        out_shape=jax.ShapeDtypeStruct((row_pad, lane_pad), jnp.float32),
        in_specs=[_SMEM] + [_VMEM] * 7,
        out_specs=_VMEM,
    )(logit_scale, x_img, w_img_full, b_img, tok, mask, w_txt, b_txt)


# ----------------------- jitted forward core (1 dispatch) --------------------

@jax.jit
def _forward_core(params, images, input_ids, attention_mask):
    batches = [int(im.shape[0]) for im in images]
    offsets = [0]
    for b in batches:
        offsets.append(offsets[-1] + b)
    n_img = offsets[-1]
    n_txt = int(input_ids.shape[0])
    hw = int(images[0].shape[2]) * int(images[0].shape[3])

    # all image views stacked & flattened once: [NI, C*H*W]
    x_img = jnp.concatenate(
        [im.reshape(im.shape[0], -1) for im in images], axis=0
    ).astype(jnp.float32)

    # avg-pool folded into the projection; embedding dim zero-padded to 128.
    w_img_full = _pad_embed_cols(_fold_img_pool_into_proj(params["w_img"], hw))
    b_img = _pad_embed_cols(params["b_img"])
    w_txt = _pad_embed_cols(params["w_txt"])
    b_txt = _pad_embed_cols(params["b_txt"])

    # TODO(synk): at CXR-BERT sizes move this gather into the kernel
    # (scalar-prefetch ids + DMA row gather) to avoid the [Bt,S,H] HBM round trip.
    tok = jnp.take(params["tok_emb"], input_ids, axis=0)       # [Bt, S, H]
    m = attention_mask.astype(jnp.float32)

    gram = _medclip_fused_call(params["logit_scale"], x_img, w_img_full, b_img,
                               tok, m, w_txt, b_txt)

    im_logits = tuple(
        gram[offsets[v]:offsets[v + 1], n_img:n_img + n_txt]
        for v in range(len(images)))
    aug_logits = tuple(
        gram[offsets[i]:offsets[i + 1], offsets[j]:offsets[j + 1]]
        for i in range(len(images)) for j in range(len(images)) if i > j)
    return im_logits, aug_logits


# ------------------------------ MedCLIP model --------------------------------

class MedCLIPPallas:
    """Synthetic MedCLIP: deterministic params, single fused Pallas forward."""

    def __init__(self, key, in_channels=4):
        k1, k2, k3 = jax.random.split(key, 3)
        # TODO(synk): pretrained BioViL ResNet & CXR-BERT replaced by small
        # synthetic projection encoders (no clean Pallas equivalent of HF models).
        self.params = {
            "w_img": jax.random.normal(k1, (in_channels, EMBED_DIM),
                                       jnp.float32) * 0.1,
            "b_img": jnp.zeros((1, EMBED_DIM), jnp.float32),
            "tok_emb": jax.random.normal(k2, (VOCAB, TEXT_HIDDEN),
                                         jnp.float32) * 0.1,
            "w_txt": jax.random.normal(k3, (TEXT_HIDDEN, EMBED_DIM),
                                       jnp.float32) * 0.1,
            "b_txt": jnp.zeros((1, EMBED_DIM), jnp.float32),
            # nn.Parameter(torch.ones([]) * np.log(1 / 0.07))
            "logit_scale": jnp.array([np.log(1.0 / 0.07)], jnp.float32),
        }

    def forward(self, images, input_ids, attention_mask):
        if not isinstance(images, (list, tuple)):
            images = [images]
        images = tuple(im[None, ...] if im.ndim == 3 else im for im in images)
        im_logits, aug_logits = _forward_core(self.params, images,
                                              input_ids, attention_mask)
        return list(im_logits), (list(aug_logits) if len(images) > 1 else None)


# ------------------------------ pure-JAX references --------------------------

def _reference_naive_f32(params, images, input_ids, attention_mask):
    """Straightforward f32 math; semantic spec (mirrors the PyTorch module)."""
    tok = params["tok_emb"][input_ids]
    m = attention_mask.astype(jnp.float32)
    pooled_t = ((tok * m[:, :, None]).sum(1)
                / jnp.maximum(m.sum(1, keepdims=True), 1.0))
    txt = _l2_normalize(pooled_t @ params["w_txt"] + params["b_txt"])
    scale = jnp.exp(params["logit_scale"][0])
    im_embs = []
    for im in images:
        x = im.reshape(im.shape[0], im.shape[1], -1).astype(jnp.float32)
        im_embs.append(_l2_normalize(jnp.mean(x, -1) @ params["w_img"]
                                     + params["b_img"]))
    im_logits = [scale * e @ txt.T for e in im_embs]
    aug = [scale * im_embs[i] @ im_embs[j].T
           for i in range(len(images)) for j in range(len(images)) if i > j]
    return im_logits, aug


def _reference_mxu_numerics(params, images, input_ids, attention_mask):
    """Pure-JAX oracle with the SAME bf16-operand / f32-accumulate numerics
    and formulation as the kernel -> tight check of the Pallas plumbing."""
    bf16 = jnp.bfloat16

    def mm(a, b):
        return jnp.dot(a.astype(bf16), b.astype(bf16),
                       preferred_element_type=jnp.float32)

    hw = int(images[0].shape[2]) * int(images[0].shape[3])
    w_img_full = _pad_embed_cols(_fold_img_pool_into_proj(params["w_img"], hw))
    b_img = _pad_embed_cols(params["b_img"])
    w_txt = _pad_embed_cols(params["w_txt"])
    b_txt = _pad_embed_cols(params["b_txt"])

    tok = params["tok_emb"][input_ids]
    m = attention_mask.astype(jnp.float32)
    denom = jnp.maximum(m.sum(1, keepdims=True), 1.0)
    w = (m / denom)[:, None, :]
    pooled_t = jnp.einsum('bqs,bsh->bqh', w.astype(bf16), tok.astype(bf16),
                          preferred_element_type=jnp.float32)[:, 0, :]
    txt = _l2_normalize(mm(pooled_t, w_txt) + b_txt)
    scale = jnp.exp(params["logit_scale"][0])

    im_embs = [
        _l2_normalize(mm(im.reshape(im.shape[0], -1).astype(jnp.float32),
                         w_img_full) + b_img)
        for im in images]
    im_logits = [scale * mm(e, txt.T) for e in im_embs]
    aug = [scale * mm(im_embs[i], im_embs[j].T)
           for i in range(len(images)) for j in range(len(images)) if i > j]
    return im_logits, aug


# --------------------------------- main ---------------------------------------

if __name__ == "__main__":
    key = jax.random.PRNGKey(0)
    k_model, k_im1, k_im2, k_ids = jax.random.split(key, 4)

    B, C, H, W = 2, 4, 16, 16   # images: NCHW
    Bt, S = 2, 8                # text batch / seq len

    model = MedCLIPPallas(k_model, in_channels=C)

    images = [
        jax.random.normal(k_im1, (B, C, H, W), jnp.float32),
        jax.random.normal(k_im2, (B, C, H, W), jnp.float32),  # augmented view
    ]
    input_ids = jax.random.randint(k_ids, (Bt, S), 0, VOCAB, jnp.int32)
    attention_mask = jnp.concatenate(
        [jnp.ones((Bt, S - 2), jnp.int32), jnp.zeros((Bt, 2), jnp.int32)], axis=1)

    im_logits, aug_logits = model.forward(images, input_ids, attention_mask)

    for x in im_logits:
        jax.block_until_ready(x)
    if aug_logits is not None:
        for x in aug_logits:
            jax.block_until_ready(x)

    assert len(im_logits) == len(images)
    assert im_logits[0].shape == (B, Bt)
    assert aug_logits is not None and len(aug_logits) == 1
    assert aug_logits[0].shape == (B, B)

    # 1) tight check against a pure-JAX oracle with kernel-matched numerics.
    ref_im, ref_aug = _reference_mxu_numerics(model.params, images, input_ids,
                                              attention_mask)
    for got, want in zip(im_logits, ref_im):
        np.testing.assert_allclose(np.asarray(got), np.asarray(want),
                                   rtol=1e-3, atol=1e-2)
    for got, want in zip(aug_logits, ref_aug):
        np.testing.assert_allclose(np.asarray(got), np.asarray(want),
                                   rtol=1e-3, atol=1e-2)

    # 2) loose semantic check against straightforward f32 math; slack covers
    #    bf16 MXU-operand rounding amplified by exp(logit_scale) ~= 14.3.
    f32_im, f32_aug = _reference_naive_f32(model.params, images, input_ids,
                                           attention_mask)
    for got, want in zip(im_logits, f32_im):
        np.testing.assert_allclose(np.asarray(got), np.asarray(want),
                                   rtol=5e-2, atol=3e-1)
    for got, want in zip(aug_logits, f32_aug):
        np.testing.assert_allclose(np.asarray(got), np.asarray(want),
                                   rtol=5e-2, atol=3e-1)

    print("KERNEL_OK")
</pallas_src>

<mosaic_0001>
module attributes {stable_mosaic.version = 11 : i64} {
  func.func @kernel(%arg0: memref<1xf32, #tpu.memory_space<smem>>, %arg1: memref<4x1024xf32, #tpu.memory_space<vmem>>, %arg2: memref<1024x128xf32, #tpu.memory_space<vmem>>, %arg3: memref<1x128xf32, #tpu.memory_space<vmem>>, %arg4: memref<2x8x32xf32, #tpu.memory_space<vmem>>, %arg5: memref<2x8xf32, #tpu.memory_space<vmem>>, %arg6: memref<32x128xf32, #tpu.memory_space<vmem>>, %arg7: memref<1x128xf32, #tpu.memory_space<vmem>>, %arg8: memref<8x128xf32, #tpu.memory_space<vmem>>) attributes {dimension_semantics = [], scalar_prefetch = 0 : i64, scratch_operands = 0 : i64, tpu.core_type = #tpu.core_type<tc>} {
    %c0 = arith.constant 0 : index
    %c0_0 = arith.constant 0 : index
    %0 = vector.load %arg1[%c0, %c0_0] : memref<4x1024xf32, #tpu.memory_space<vmem>>, vector<4x1024xf32>
    %1 = arith.truncf %0 : vector<4x1024xf32> to vector<4x1024xbf16>
    %c0_1 = arith.constant 0 : index
    %c0_2 = arith.constant 0 : index
    %2 = vector.load %arg2[%c0_1, %c0_2] : memref<1024x128xf32, #tpu.memory_space<vmem>>, vector<1024x128xf32>
    %3 = arith.truncf %2 : vector<1024x128xf32> to vector<1024x128xbf16>
    %cst = arith.constant dense<0.000000e+00> : vector<4x128xf32>
    %4 = tpu.matmul %1, %3, %cst {dimension_numbers = #tpu.dot_dimension_numbers<[1], [0], [0], [1], [0, 0, 1, 1], [], []>} : vector<4x1024xbf16>, vector<1024x128xbf16>, vector<4x128xf32> -> vector<4x128xf32>
    %c0_3 = arith.constant 0 : index
    %c0_4 = arith.constant 0 : index
    %5 = vector.load %arg3[%c0_3, %c0_4] : memref<1x128xf32, #tpu.memory_space<vmem>>, vector<1x128xf32>
    %6 = vector.broadcast %5 : vector<1x128xf32> to vector<4x128xf32>
    %7 = arith.addf %4, %6 : vector<4x128xf32>
    %c0_5 = arith.constant 0 : index
    %c0_6 = arith.constant 0 : index
    %c0_7 = arith.constant 0 : index
    %8 = vector.load %arg4[%c0_5, %c0_6, %c0_7] : memref<2x8x32xf32, #tpu.memory_space<vmem>>, vector<2x8x32xf32>
    %c0_8 = arith.constant 0 : index
    %c0_9 = arith.constant 0 : index
    %9 = vector.load %arg5[%c0_8, %c0_9] : memref<2x8xf32, #tpu.memory_space<vmem>>, vector<2x8xf32>
    %cst_10 = arith.constant dense<0.000000e+00> : vector<2xf32>
    %10 = vector.multi_reduction <add>, %9, %cst_10 [1] : vector<2x8xf32> to vector<2xf32>
    %11 = vector.shape_cast %10 : vector<2xf32> to vector<2x1xf32>
    %cst_11 = arith.constant 1.000000e+00 : f32
    %12 = vector.broadcast %cst_11 : f32 to vector<2x1xf32>
    %13 = arith.maximumf %11, %12 : vector<2x1xf32>
    %14 = vector.broadcast %13 : vector<2x1xf32> to vector<2x8xf32>
    %15 = arith.divf %9, %14 : vector<2x8xf32>
    %16 = vector.shape_cast %15 : vector<2x8xf32> to vector<2x1x8xf32>
    %17 = arith.truncf %16 : vector<2x1x8xf32> to vector<2x1x8xbf16>
    %18 = arith.truncf %8 : vector<2x8x32xf32> to vector<2x8x32xbf16>
    "tpu.trace_start"() <{level = 10 : i32, message = "bqs,bsh->bqh"}> : () -> ()
    %cst_12 = arith.constant dense<0.000000e+00> : vector<2x1x32xf32>
    %19 = tpu.matmul %17, %18, %cst_12 {dimension_numbers = #tpu.dot_dimension_numbers<[2], [1], [1], [2], [0, 0, 0, 1, 1, 2], [0], [0]>} : vector<2x1x8xbf16>, vector<2x8x32xbf16>, vector<2x1x32xf32> -> vector<2x1x32xf32>
    "tpu.trace_stop"() : () -> ()
    %20 = vector.shape_cast %19 : vector<2x1x32xf32> to vector<2x32xf32>
    %21 = arith.truncf %20 : vector<2x32xf32> to vector<2x32xbf16>
    %c0_13 = arith.constant 0 : index
    %c0_14 = arith.constant 0 : index
    %22 = vector.load %arg6[%c0_13, %c0_14] : memref<32x128xf32, #tpu.memory_space<vmem>>, vector<32x128xf32>
    %23 = arith.truncf %22 : vector<32x128xf32> to vector<32x128xbf16>
    %cst_15 = arith.constant dense<0.000000e+00> : vector<2x128xf32>
    %24 = tpu.matmul %21, %23, %cst_15 {dimension_numbers = #tpu.dot_dimension_numbers<[1], [0], [0], [1], [0, 0, 1, 1], [], []>} : vector<2x32xbf16>, vector<32x128xbf16>, vector<2x128xf32> -> vector<2x128xf32>
    %c0_16 = arith.constant 0 : index
    %c0_17 = arith.constant 0 : index
    %25 = vector.load %arg7[%c0_16, %c0_17] : memref<1x128xf32, #tpu.memory_space<vmem>>, vector<1x128xf32>
    %26 = vector.broadcast %25 : vector<1x128xf32> to vector<2x128xf32>
    %27 = arith.addf %24, %26 : vector<2x128xf32>
    %28 = arith.mulf %7, %7 : vector<4x128xf32>
    %cst_18 = arith.constant dense<0.000000e+00> : vector<4xf32>
    %29 = vector.multi_reduction <add>, %28, %cst_18 [1] : vector<4x128xf32> to vector<4xf32>
    %30 = vector.shape_cast %29 : vector<4xf32> to vector<4x1xf32>
    %cst_19 = arith.constant 9.99999996E-13 : f32
    %31 = vector.broadcast %cst_19 : f32 to vector<4x1xf32>
    %32 = arith.addf %30, %31 : vector<4x1xf32>
    %33 = math.rsqrt %32 : vector<4x1xf32>
    %34 = vector.broadcast %33 : vector<4x1xf32> to vector<4x128xf32>
    %35 = arith.mulf %7, %34 : vector<4x128xf32>
    %36 = arith.mulf %27, %27 : vector<2x128xf32>
    %cst_20 = arith.constant dense<0.000000e+00> : vector<2xf32>
    %37 = vector.multi_reduction <add>, %36, %cst_20 [1] : vector<2x128xf32> to vector<2xf32>
    %38 = vector.shape_cast %37 : vector<2xf32> to vector<2x1xf32>
    %cst_21 = arith.constant 9.99999996E-13 : f32
    %39 = vector.broadcast %cst_21 : f32 to vector<2x1xf32>
    %40 = arith.addf %38, %39 : vector<2x1xf32>
    %41 = math.rsqrt %40 : vector<2x1xf32>
    %42 = vector.broadcast %41 : vector<2x1xf32> to vector<2x128xf32>
    %43 = arith.mulf %27, %42 : vector<2x128xf32>
    %cst_22 = arith.constant 0.000000e+00 : f32
    %44 = vector.broadcast %cst_22 : f32 to vector<2x128xf32>
    %45 = tpu.concatenate %35, %43, %44 in 0 : vector<4x128xf32>, vector<2x128xf32>, vector<2x128xf32> -> vector<8x128xf32>
    %cst_23 = arith.constant 0.000000e+00 : f32
    %46 = vector.broadcast %cst_23 : f32 to vector<120x128xf32>
    %47 = tpu.concatenate %45, %46 in 0 : vector<8x128xf32>, vector<120x128xf32> -> vector<128x128xf32>
    %c0_24 = arith.constant 0 : index
    %48 = memref.load %arg0[%c0_24] : memref<1xf32, #tpu.memory_space<smem>>
    %49 = math.exp %48 : f32
    %50 = arith.truncf %45 : vector<8x128xf32> to vector<8x128xbf16>
    %51 = arith.truncf %47 : vector<128x128xf32> to vector<128x128xbf16>
    %cst_25 = arith.constant dense<0.000000e+00> : vector<8x128xf32>
    %52 = tpu.matmul %50, %51, %cst_25 {dimension_numbers = #tpu.dot_dimension_numbers<[1], [1], [0], [0], [0, 0, 1, 0], [], []>} : vector<8x128xbf16>, vector<128x128xbf16>, vector<8x128xf32> -> vector<8x128xf32>
    %53 = vector.broadcast %49 : f32 to vector<8x128xf32>
    %54 = arith.mulf %53, %52 : vector<8x128xf32>
    %c0_26 = arith.constant 0 : index
    %c0_27 = arith.constant 0 : index
    %55 = vector.load %arg8[%c0_26, %c0_27] : memref<8x128xf32, #tpu.memory_space<vmem>>, vector<8x128xf32>
    tpu.vector_store %arg8[%c0_26, %c0_27], %54 {strides = array<i32>} : memref<8x128xf32, #tpu.memory_space<vmem>>, vector<8x128xf32>,
    return
  }
}

</mosaic_0001>

<llo_original>
// kernel: _forward_core.1
$region0: #{_forward_core.1}
  #allocation0 [shape = 'u32[]', space=smem, size = 0x4, offset = 0x4, fixed_abs, tag = 'smem constant byte address 0x4 - core index']
  #allocation1 [shape = 'u32[72,128]{1,0:T(1,128)}', space=vmem, size = 0x9000, scoped, tag = 'internal scratch']
  #allocation2 [shape = 'f32[1]{0:T(128)S(6)}', space=smem, size = 0x200, scoped, tag = 'scoped memory for _forward_core.1']
  %s0 = inlined_call_operand.<no memory space> [shape: f32[1], index: 0, kind: input, shape index: {}]
  %s1 = inlined_call_operand.vmem [shape: f32[4,1024], index: 1, kind: input, shape index: {}]
  %s2 = inlined_call_operand.vmem [shape: f32[1024,128], index: 2, kind: input, shape index: {}]
  %s3 = inlined_call_operand.vmem [shape: f32[1,128], index: 3, kind: input, shape index: {}]
  %s4 = inlined_call_operand.vmem [shape: f32[2,8,32], index: 4, kind: input, shape index: {}]
  %s5 = inlined_call_operand.vmem [shape: f32[2,8], index: 5, kind: input, shape index: {}]
  %s6 = inlined_call_operand.vmem [shape: f32[32,128], index: 6, kind: input, shape index: {}]
  %s7 = inlined_call_operand.vmem [shape: f32[1,128], index: 7, kind: input, shape index: {}]
  %s8 = inlined_call_operand.vmem [shape: f32[8,128], index: 8, kind: output, shape index: {}]
  %s9 = sld [smem:[#allocation0]]
  $region42: #{_forward_core.1} parent=0
    _
  %s11 = ssub.s32 1, %s9
  %s12 = scalar_select 0, %s11, %s9
  %13 = sst [smem:[#allocation2]] %s0
  // Predicated region
  $region2: #{_forward_core.1} parent=0 // pred_check
    _
  $region3: #{_forward_core.1} parent=0 // pred_check_branch
    %15 = sbr.rel (0) target = $region5
  $region4: #{_forward_core.1} parent=0 // pred_region
    _
  $region5: #{_forward_core.1} parent=0 // pred_fallthru
    _
  // Predicated region
  $region6: #{_forward_core.1} parent=0 // pred_check
    _
  $region7: #{_forward_core.1} parent=0 // pred_check_branch
    %17 = sbr.rel (0) target = $region9
  $region8: #{_forward_core.1} parent=0 // pred_region
    _
  $region9: #{_forward_core.1} parent=0 // pred_fallthru
    _
  // Predicated region
  $region10: #{_forward_core.1} parent=0 // pred_check
    _
  $region11: #{_forward_core.1} parent=0 // pred_check_branch
    %19 = sbr.rel (0) target = $region13
  $region12: #{_forward_core.1} parent=0 // pred_region
    _
  $region13: #{_forward_core.1} parent=0 // pred_fallthru
    _
  // Predicated region
  $region14: #{_forward_core.1} parent=0 // pred_check
    _
  $region15: #{_forward_core.1} parent=0 // pred_check_branch
    %21 = sbr.rel (0) target = $region17
  $region16: #{_forward_core.1} parent=0 // pred_region
    _
  $region17: #{_forward_core.1} parent=0 // pred_fallthru
    _
  // Predicated region
  $region18: #{_forward_core.1} parent=0 // pred_check
    _
  $region19: #{_forward_core.1} parent=0 // pred_check_branch
    %23 = sbr.rel (0) target = $region21
  $region20: #{_forward_core.1} parent=0 // pred_region
    _
  $region21: #{_forward_core.1} parent=0 // pred_fallthru
    _
  // Predicated region
  $region22: #{_forward_core.1} parent=0 // pred_check
    _
  $region23: #{_forward_core.1} parent=0 // pred_check_branch
    %25 = sbr.rel (0) target = $region25
  $region24: #{_forward_core.1} parent=0 // pred_region
    _
  $region25: #{_forward_core.1} parent=0 // pred_fallthru
    _
  // Predicated region
  $region26: #{_forward_core.1} parent=0 // pred_check
    _
  $region27: #{_forward_core.1} parent=0 // pred_check_branch
    %27 = sbr.rel (0) target = $region29
  $region28: #{_forward_core.1} parent=0 // pred_region
    _
  $region29: #{_forward_core.1} parent=0 // pred_fallthru
    _
  // Predicated region
  $region30: #{_forward_core.1} parent=0 // pred_check
    _
  $region31: #{_forward_core.1} parent=0 // pred_check_branch
    %29 = sbr.rel (0) target = $region33
  $region32: #{_forward_core.1} parent=0 // pred_region
    _
  $region33: #{_forward_core.1} parent=0 // pred_fallthru
    _
  %v31 = vld [vmem:[%s1] sm:$0xff]
  %v32 = vld [vmem:[%s1 + $0x8] sm:$0xff]
  %v33 = vld [vmem:[%s1 + $0x10] sm:$0xff]
  %v34 = vld [vmem:[%s1 + $0x18] sm:$0xff]
  %39 = vst [vmem:[#allocation1] ss:$2 sm:$0xff] %v31
  %s40 = scalar_lea.vmem [#allocation1], 16
  %41 = vst [vmem:[%s40] ss:$2 sm:$0xff] %v32
  %s42 = scalar_lea.vmem [#allocation1], 32
  %43 = vst [vmem:[%s42] ss:$2 sm:$0xff] %v33
  %s44 = scalar_lea.vmem [#allocation1], 48
  %45 = vst [vmem:[%s44] ss:$2 sm:$0xff] %v34
  %v46 = vld.sshfl [vmem:[#allocation1] sm:$0xff pattern:$0x75316420]
  %v47 = vld.sshfl [vmem:[#allocation1 + $0x8] sm:$0xff pattern:$0x75316420]
  %v48 = vld.sshfl [vmem:[#allocation1 + $0x10] sm:$0xff pattern:$0x75316420]
  %v49 = vld.sshfl [vmem:[#allocation1 + $0x18] sm:$0xff pattern:$0x75316420]
  %v50 = vld.sshfl [vmem:[#allocation1 + $0x20] sm:$0xff pattern:$0x75316420]
  %v51 = vld.sshfl [vmem:[#allocation1 + $0x28] sm:$0xff pattern:$0x75316420]
  %v52 = vld.sshfl [vmem:[#allocation1 + $0x30] sm:$0xff pattern:$0x75316420]
  %v53 = vld.sshfl [vmem:[#allocation1 + $0x38] sm:$0xff pattern:$0x75316420]
  %v62 = vpack.c.bf16 %v46, %v46
  %v63 = vpack.c.bf16 %v47, %v47
  %v64 = vpack.c.bf16 %v48, %v48
  %v65 = vpack.c.bf16 %v49, %v49
  %v66 = vpack.c.bf16 %v50, %v50
  %v67 = vpack.c.bf16 %v51, %v51
  %v68 = vpack.c.bf16 %v52, %v52
  %v69 = vpack.c.bf16 %v53, %v53
  %v70 = vld [vmem:[%s2] sm:$0xff]
  %v71 = vld [vmem:[%s2 + $0x8] sm:$0xff]
  %v72 = vld [vmem:[%s2 + $0x10] sm:$0xff]
  %v73 = vld [vmem:[%s2 + $0x18] sm:$0xff]
  %v74 = vld [vmem:[%s2 + $0x20] sm:$0xff]
  %v75 = vld [vmem:[%s2 + $0x28] sm:$0xff]
  %v76 = vld [vmem:[%s2 + $0x30] sm:$0xff]
  %v77 = vld [vmem:[%s2 + $0x38] sm:$0xff]
  %v78 = vld [vmem:[%s2 + $0x40] sm:$0xff]
  %v79 = vld [vmem:[%s2 + $0x48] sm:$0xff]
  %v80 = vld [vmem:[%s2 + $0x50] sm:$0xff]
  %v81 = vld [vmem:[%s2 + $0x58] sm:$0xff]
  %v82 = vld [vmem:[%s2 + $0x60] sm:$0xff]
  %v83 = vld [vmem:[%s2 + $0x68] sm:$0xff]
  %v84 = vld [vmem:[%s2 + $0x70] sm:$0xff]
  %v85 = vld [vmem:[%s2 + $0x78] sm:$0xff]
  %v86 = vld [vmem:[%s2 + $0x80] sm:$0xff]
  %v87 = vld [vmem:[%s2 + $0x88] sm:$0xff]
  %v88 = vld [vmem:[%s2 + $0x90] sm:$0xff]
  %v89 = vld [vmem:[%s2 + $0x98] sm:$0xff]
  %v90 = vld [vmem:[%s2 + $0xa0] sm:$0xff]
  %v91 = vld [vmem:[%s2 + $0xa8] sm:$0xff]
  %v92 = vld [vmem:[%s2 + $0xb0] sm:$0xff]
  %v93 = vld [vmem:[%s2 + $0xb8] sm:$0xff]
  %v94 = vld [vmem:[%s2 + $0xc0] sm:$0xff]
  %v95 = vld [vmem:[%s2 + $0xc8] sm:$0xff]
  %v96 = vld [vmem:[%s2 + $0xd0] sm:$0xff]
  %v97 = vld [vmem:[%s2 + $0xd8] sm:$0xff]
  %v98 = vld [vmem:[%s2 + $0xe0] sm:$0xff]
  %v99 = vld [vmem:[%s2 + $0xe8] sm:$0xff]
  %v100 = vld [vmem:[%s2 + $0xf0] sm:$0xff]
  %v101 = vld [vmem:[%s2 + $0xf8] sm:$0xff]
  %v102 = vld [vmem:[%s2 + $0x100] sm:$0xff]
  %v103 = vld [vmem:[%s2 + $0x108] sm:$0xff]
  %v104 = vld [vmem:[%s2 + $0x110] sm:$0xff]
  %v105 = vld [vmem:[%s2 + $0x118] sm:$0xff]
  %v106 = vld [vmem:[%s2 + $0x120] sm:$0xff]
  %v107 = vld [vmem:[%s2 + $0x128] sm:$0xff]
  %v108 = vld [vmem:[%s2 + $0x130] sm:$0xff]
  %v109 = vld [vmem:[%s2 + $0x138] sm:$0xff]
  %v110 = vld [vmem:[%s2 + $0x140] sm:$0xff]
  %v111 = vld [vmem:[%s2 + $0x148] sm:$0xff]
  %v112 = vld [vmem:[%s2 + $0x150] sm:$0xff]
  %v113 = vld [vmem:[%s2 + $0x158] sm:$0xff]
  %v114 = vld [vmem:[%s2 + $0x160] sm:$0xff]
  %v115 = vld [vmem:[%s2 + $0x168] sm:$0xff]
  %v116 = vld [vmem:[%s2 + $0x170] sm:$0xff]
  %v117 = vld [vmem:[%s2 + $0x178] sm:$0xff]
  %v118 = vld [vmem:[%s2 + $0x180] sm:$0xff]
  %v119 = vld [vmem:[%s2 + $0x188] sm:$0xff]
  %v120 = vld [vmem:[%s2 + $0x190] sm:$0xff]
  %v121 = vld [vmem:[%s2 + $0x198] sm:$0xff]
  %v122 = vld [vmem:[%s2 + $0x1a0] sm:$0xff]
  %v123 = vld [vmem:[%s2 + $0x1a8] sm:$0xff]
  %v124 = vld [vmem:[%s2 + $0x1b0] sm:$0xff]
  %v125 = vld [vmem:[%s2 + $0x1b8] sm:$0xff]
  %v126 = vld [vmem:[%s2 + $0x1c0] sm:$0xff]
  %v127 = vld [vmem:[%s2 + $0x1c8] sm:$0xff]
  %v128 = vld [vmem:[%s2 + $0x1d0] sm:$0xff]
  %v129 = vld [vmem:[%s2 + $0x1d8] sm:$0xff]
  %v130 = vld [vmem:[%s2 + $0x1e0] sm:$0xff]
  %v131 = vld [vmem:[%s2 + $0x1e8] sm:$0xff]
  %v132 = vld [vmem:[%s2 + $0x1f0] sm:$0xff]
  %v133 = vld [vmem:[%s2 + $0x1f8] sm:$0xff]
  %v134 = vld [vmem:[%s2 + $0x200] sm:$0xff]
  %v135 = vld [vmem:[%s2 + $0x208] sm:$0xff]
  %v136 = vld [vmem:[%s2 + $0x210] sm:$0xff]
  %v137 = vld [vmem:[%s2 + $0x218] sm:$0xff]
  %v138 = vld [vmem:[%s2 + $0x220] sm:$0xff]
  %v139 = vld [vmem:[%s2 + $0x228] sm:$0xff]
  %v140 = vld [vmem:[%s2 + $0x230] sm:$0xff]
  %v141 = vld [vmem:[%s2 + $0x238] sm:$0xff]
  %v142 = vld [vmem:[%s2 + $0x240] sm:$0xff]
  %v143 = vld [vmem:[%s2 + $0x248] sm:$0xff]
  %v144 = vld [vmem:[%s2 + $0x250] sm:$0xff]
  %v145 = vld [vmem:[%s2 + $0x258] sm:$0xff]
  %v146 = vld [vmem:[%s2 + $0x260] sm:$0xff]
  %v147 = vld [vmem:[%s2 + $0x268] sm:$0xff]
  %v148 = vld [vmem:[%s2 + $0x270] sm:$0xff]
  %v149 = vld [vmem:[%s2 + $0x278] sm:$0xff]
  %v150 = vld [vmem:[%s2 + $0x280] sm:$0xff]
  %v151 = vld [vmem:[%s2 + $0x288] sm:$0xff]
  %v152 = vld [vmem:[%s2 + $0x290] sm:$0xff]
  %v153 = vld [vmem:[%s2 + $0x298] sm:$0xff]
  %v154 = vld [vmem:[%s2 + $0x2a0] sm:$0xff]
  %v155 = vld [vmem:[%s2 + $0x2a8] sm:$0xff]
  %v156 = vld [vmem:[%s2 + $0x2b0] sm:$0xff]
  %v157 = vld [vmem:[%s2 + $0x2b8] sm:$0xff]
  %v158 = vld [vmem:[%s2 + $0x2c0] sm:$0xff]
  %v159 = vld [vmem:[%s2 + $0x2c8] sm:$0xff]
  %v160 = vld [vmem:[%s2 + $0x2d0] sm:$0xff]
  %v161 = vld [vmem:[%s2 + $0x2d8] sm:$0xff]
  %v162 = vld [vmem:[%s2 + $0x2e0] sm:$0xff]
  %v163 = vld [vmem:[%s2 + $0x2e8] sm:$0xff]
  %v164 = vld [vmem:[%s2 + $0x2f0] sm:$0xff]
  %v165 = vld [vmem:[%s2 + $0x2f8] sm:$0xff]
  %v166 = vld [vmem:[%s2 + $0x300] sm:$0xff]
  %v167 = vld [vmem:[%s2 + $0x308] sm:$0xff]
  %v168 = vld [vmem:[%s2 + $0x310] sm:$0xff]
  %v169 = vld [vmem:[%s2 + $0x318] sm:$0xff]
  %v170 = vld [vmem:[%s2 + $0x320] sm:$0xff]
  %v171 = vld [vmem:[%s2 + $0x328] sm:$0xff]
  %v172 = vld [vmem:[%s2 + $0x330] sm:$0xff]
  %v173 = vld [vmem:[%s2 + $0x338] sm:$0xff]
  %v174 = vld [vmem:[%s2 + $0x340] sm:$0xff]
  %v175 = vld [vmem:[%s2 + $0x348] sm:$0xff]
  %v176 = vld [vmem:[%s2 + $0x350] sm:$0xff]
  %v177 = vld [vmem:[%s2 + $0x358] sm:$0xff]
  %v178 = vld [vmem:[%s2 + $0x360] sm:$0xff]
  %v179 = vld [vmem:[%s2 + $0x368] sm:$0xff]
  %v180 = vld [vmem:[%s2 + $0x370] sm:$0xff]
  %v181 = vld [vmem:[%s2 + $0x378] sm:$0xff]
  %v182 = vld [vmem:[%s2 + $0x380] sm:$0xff]
  %v183 = vld [vmem:[%s2 + $0x388] sm:$0xff]
  %v184 = vld [vmem:[%s2 + $0x390] sm:$0xff]
  %v185 = vld [vmem:[%s2 + $0x398] sm:$0xff]
  %v186 = vld [vmem:[%s2 + $0x3a0] sm:$0xff]
  %v187 = vld [vmem:[%s2 + $0x3a8] sm:$0xff]
  %v188 = vld [vmem:[%s2 + $0x3b0] sm:$0xff]
  %v189 = vld [vmem:[%s2 + $0x3b8] sm:$0xff]
  %v190 = vld [vmem:[%s2 + $0x3c0] sm:$0xff]
  %v191 = vld [vmem:[%s2 + $0x3c8] sm:$0xff]
  %v192 = vld [vmem:[%s2 + $0x3d0] sm:$0xff]
  %v193 = vld [vmem:[%s2 + $0x3d8] sm:$0xff]
  %v194 = vld [vmem:[%s2 + $0x3e0] sm:$0xff]
  %v195 = vld [vmem:[%s2 + $0x3e8] sm:$0xff]
  %v196 = vld [vmem:[%s2 + $0x3f0] sm:$0xff]
  %v197 = vld [vmem:[%s2 + $0x3f8] sm:$0xff]
  %v198 = vpack.c.bf16 %v71, %v70
  %v199 = vpack.c.bf16 %v73, %v72
  %v200 = vpack.c.bf16 %v75, %v74
  %v201 = vpack.c.bf16 %v77, %v76
  %v202 = vpack.c.bf16 %v79, %v78
  %v203 = vpack.c.bf16 %v81, %v80
  %v204 = vpack.c.bf16 %v83, %v82
  %v205 = vpack.c.bf16 %v85, %v84
  %v206 = vpack.c.bf16 %v87, %v86
  %v207 = vpack.c.bf16 %v89, %v88
  %v208 = vpack.c.bf16 %v91, %v90
  %v209 = vpack.c.bf16 %v93, %v92
  %v210 = vpack.c.bf16 %v95, %v94
  %v211 = vpack.c.bf16 %v97, %v96
  %v212 = vpack.c.bf16 %v99, %v98
  %v213 = vpack.c.bf16 %v101, %v100
  %v214 = vpack.c.bf16 %v103, %v102
  %v215 = vpack.c.bf16 %v105, %v104
  %v216 = vpack.c.bf16 %v107, %v106
  %v217 = vpack.c.bf16 %v109, %v108
  %v218 = vpack.c.bf16 %v111, %v110
  %v219 = vpack.c.bf16 %v113, %v112
  %v220 = vpack.c.bf16 %v115, %v114
  %v221 = vpack.c.bf16 %v117, %v116
  %v222 = vpack.c.bf16 %v119, %v118
  %v223 = vpack.c.bf16 %v121, %v120
  %v224 = vpack.c.bf16 %v123, %v122
  %v225 = vpack.c.bf16 %v125, %v124
  %v226 = vpack.c.bf16 %v127, %v126
  %v227 = vpack.c.bf16 %v129, %v128
  %v228 = vpack.c.bf16 %v131, %v130
  %v229 = vpack.c.bf16 %v133, %v132
  %v230 = vpack.c.bf16 %v135, %v134
  %v231 = vpack.c.bf16 %v137, %v136
  %v232 = vpack.c.bf16 %v139, %v138
  %v233 = vpack.c.bf16 %v141, %v140
  %v234 = vpack.c.bf16 %v143, %v142
  %v235 = vpack.c.bf16 %v145, %v144
  %v236 = vpack.c.bf16 %v147, %v146
  %v237 = vpack.c.bf16 %v149, %v148
  %v238 = vpack.c.bf16 %v151, %v150
  %v239 = vpack.c.bf16 %v153, %v152
  %v240 = vpack.c.bf16 %v155, %v154
  %v241 = vpack.c.bf16 %v157, %v156
  %v242 = vpack.c.bf16 %v159, %v158
  %v243 = vpack.c.bf16 %v161, %v160
  %v244 = vpack.c.bf16 %v163, %v162
  %v245 = vpack.c.bf16 %v165, %v164
  %v246 = vpack.c.bf16 %v167, %v166
  %v247 = vpack.c.bf16 %v169, %v168
  %v248 = vpack.c.bf16 %v171, %v170
  %v249 = vpack.c.bf16 %v173, %v172
  %v250 = vpack.c.bf16 %v175, %v174
  %v251 = vpack.c.bf16 %v177, %v176
  %v252 = vpack.c.bf16 %v179, %v178
  %v253 = vpack.c.bf16 %v181, %v180
  %v254 = vpack.c.bf16 %v183, %v182
  %v255 = vpack.c.bf16 %v185, %v184
  %v256 = vpack.c.bf16 %v187, %v186
  %v257 = vpack.c.bf16 %v189, %v188
  %v258 = vpack.c.bf16 %v191, %v190
  %v259 = vpack.c.bf16 %v193, %v192
  %v260 = vpack.c.bf16 %v195, %v194
  %v261 = vpack.c.bf16 %v197, %v196
  %v262 = vld [vmem:[%s3] sm:$0x1]
  %v264 = vperm.slane %v262, 0
  %266 = vmatpush.bf16.msra.mxu0 %v205
  %267 = vmatpush.bf16.msra.mxu0 %v204
  %268 = vmatpush.bf16.msra.mxu0 %v203
  %269 = vmatpush.bf16.msra.mxu0 %v202
  %270 = vmatpush.bf16.msra.mxu0 %v201
  %271 = vmatpush.bf16.msra.mxu0 %v200
  %272 = vmatpush.bf16.msra.mxu0 %v199
  %273 = vmatpush.bf16.msra.mxu0 %v198
  %274 = vmatmul.bf16.gmra.mxu0 %v62
  %v275 = vpop.f32.mrf.mxu0
  %v276 = vadd.f32 %v264, %v275
  %v277 = vpop.f32.mrf.mxu0
  %278 = vdwg.mxu0
  %279 = vmatpush.bf16.msra.mxu0 %v213
  %280 = vmatpush.bf16.msra.mxu0 %v212
  %281 = vmatpush.bf16.msra.mxu0 %v211
  %282 = vmatpush.bf16.msra.mxu0 %v210
  %283 = vmatpush.bf16.msra.mxu0 %v209
  %284 = vmatpush.bf16.msra.mxu0 %v208
  %285 = vmatpush.bf16.msra.mxu0 %v207
  %286 = vmatpush.bf16.msra.mxu0 %v206
  %287 = vmatmul.bf16.gmra.mxu0 %v63
  %v288 = vpop.f32.mrf.mxu0
  %v289 = vadd.f32 %v276, %v288
  %v290 = vpop.f32.mrf.mxu0
  %291 = vdwg.mxu0
  %292 = vmatpush.bf16.msra.mxu0 %v221
  %293 = vmatpush.bf16.msra.mxu0 %v220
  %294 = vmatpush.bf16.msra.mxu0 %v219
  %295 = vmatpush.bf16.msra.mxu0 %v218
  %296 = vmatpush.bf16.msra.mxu0 %v217
  %297 = vmatpush.bf16.msra.mxu0 %v216
  %298 = vmatpush.bf16.msra.mxu0 %v215
  %299 = vmatpush.bf16.msra.mxu0 %v214
  %300 = vmatmul.bf16.gmra.mxu0 %v64
  %v301 = vpop.f32.mrf.mxu0
  %v302 = vadd.f32 %v289, %v301
  %v303 = vpop.f32.mrf.mxu0
  %304 = vdwg.mxu0
  %305 = vmatpush.bf16.msra.mxu0 %v229
  %306 = vmatpush.bf16.msra.mxu0 %v228
  %307 = vmatpush.bf16.msra.mxu0 %v227
  %308 = vmatpush.bf16.msra.mxu0 %v226
  %309 = vmatpush.bf16.msra.mxu0 %v225
  %310 = vmatpush.bf16.msra.mxu0 %v224
  %311 = vmatpush.bf16.msra.mxu0 %v223
  %312 = vmatpush.bf16.msra.mxu0 %v222
  %313 = vmatmul.bf16.gmra.mxu0 %v65
  %v314 = vpop.f32.mrf.mxu0
  %v315 = vadd.f32 %v302, %v314
  %v316 = vpop.f32.mrf.mxu0
  %317 = vdwg.mxu0
  %318 = vmatpush.bf16.msra.mxu0 %v237
  %319 = vmatpush.bf16.msra.mxu0 %v236
  %320 = vmatpush.bf16.msra.mxu0 %v235
  %321 = vmatpush.bf16.msra.mxu0 %v234
  %322 = vmatpush.bf16.msra.mxu0 %v233
  %323 = vmatpush.bf16.msra.mxu0 %v232
  %324 = vmatpush.bf16.msra.mxu0 %v231
  %325 = vmatpush.bf16.msra.mxu0 %v230
  %326 = vmatmul.bf16.gmra.mxu0 %v66
  %v327 = vpop.f32.mrf.mxu0
  %v328 = vadd.f32 %v315, %v327
  %v329 = vpop.f32.mrf.mxu0
  %330 = vdwg.mxu0
  %331 = vmatpush.bf16.msra.mxu0 %v245
  %332 = vmatpush.bf16.msra.mxu0 %v244
  %333 = vmatpush.bf16.msra.mxu0 %v243
  %334 = vmatpush.bf16.msra.mxu0 %v242
  %335 = vmatpush.bf16.msra.mxu0 %v241
  %336 = vmatpush.bf16.msra.mxu0 %v240
  %337 = vmatpush.bf16.msra.mxu0 %v239
  %338 = vmatpush.bf16.msra.mxu0 %v238
  %339 = vmatmul.bf16.gmra.mxu0 %v67
  %v340 = vpop.f32.mrf.mxu0
  %v341 = vadd.f32 %v328, %v340
  %v342 = vpop.f32.mrf.mxu0
  %343 = vdwg.mxu0
  %344 = vmatpush.bf16.msra.mxu0 %v253
  %345 = vmatpush.bf16.msra.mxu0 %v252
  %346 = vmatpush.bf16.msra.mxu0 %v251
  %347 = vmatpush.bf16.msra.mxu0 %v250
  %348 = vmatpush.bf16.msra.mxu0 %v249
  %349 = vmatpush.bf16.msra.mxu0 %v248
  %350 = vmatpush.bf16.msra.mxu0 %v247
  %351 = vmatpush.bf16.msra.mxu0 %v246
  %352 = vmatmul.bf16.gmra.mxu0 %v68
  %v353 = vpop.f32.mrf.mxu0
  %v354 = vadd.f32 %v341, %v353
  %v355 = vpop.f32.mrf.mxu0
  %356 = vdwg.mxu0
  %357 = vmatpush.bf16.msra.mxu0 %v261
  %358 = vmatpush.bf16.msra.mxu0 %v260
  %359 = vmatpush.bf16.msra.mxu0 %v259
  %360 = vmatpush.bf16.msra.mxu0 %v258
  %361 = vmatpush.bf16.msra.mxu0 %v257
  %362 = vmatpush.bf16.msra.mxu0 %v256
  %363 = vmatpush.bf16.msra.mxu0 %v255
  %364 = vmatpush.bf16.msra.mxu0 %v254
  %365 = vmatmul.bf16.gmra.mxu0 %v69
  %v366 = vpop.f32.mrf.mxu0
  %v367 = vadd.f32 %v354, %v366
  %v368 = vpop.f32.mrf.mxu0
  %369 = vdwg.mxu0
  %v370 = vld [vmem:[%s4] sm:$0xff]
  %v371 = vld [vmem:[%s4 + $0x8] sm:$0xff]
  %v372 = vld [vmem:[%s5] sm:$0x3]
  %vm373 = vcmask 58368
  %v374 = vsel %vm373, %v372, 0.0
  %375 = vadd.xlane.f32.xlu0 %v374
  %v376 = vpop.xlane.xlu0 %375
  %v377 = vmax.f32 %v376, 1.0
  %v378 = vrcp.pop %v377
  %v379 = vmul.f32 %v377, %v378
  %v380 = vsub.f32 1.0, %v379
  %v381 = vmul.f32 %v378, %v380
  %v382 = vadd.f32 %v378, %v381
  %vm383 = vweird.f32 %v377
  %vm384 = vweird.f32 %v378
  %vm385 = vmor %vm383, %vm384
  %v386 = vsel %vm385, %v378, %v382
  %v387 = vand.u32 2147483647, %v377
  %vm388 = vcmp.eq.f32.partialorder %v387, 8.507059e+37
  %v389 = vand.u32 %v377, 2147483648
  %v390 = vor.u32 1.1754944e-38, %v389
  %v391 = vsel %vm388, %v390, %v386
  %v392 = vmul.f32 %v372, %v391
  %v394 = vrot.slane %v392, 1
  %v396 = vpack.c.bf16 %v392, %v392
  %v397 = vpack.c.bf16 %v394, %v394
  %v398 = vpack.c.bf16 %v370, %v370
  %v399 = vpack.c.bf16 %v371, %v371
  %vm400 = vcmask 64512
  %v402 = vsel %vm400, %v396, 0
  %vm404 = vcmask 1043456
  %v406 = vsel %vm404, %v398, 0
  %408 = vmatpush.bf16.msra.mxu0 0
  %409 = vmatpush.bf16.msra.mxu0 0
  %410 = vmatpush.bf16.msra.mxu0 0
  %411 = vmatpush.bf16.msra.mxu0 0
  %412 = vmatpush.bf16.msra.mxu0 0
  %413 = vmatpush.bf16.msra.mxu0 0
  %414 = vmatpush.bf16.msra.mxu0 0
  %415 = vmatpush.bf16.msra.mxu0 %v406
  %416 = vmatmul.bf16.gmra.mxu0 %v402
  %v417 = vpop.f32.mrf.mxu0
  %v418 = vadd.f32 0.0, %v417
  %v419 = vpop.f32.mrf.mxu0
  %420 = vdwg.mxu0
  %v422 = vsel %vm400, %v397, 0
  %v425 = vsel %vm404, %v399, 0
  %427 = vmatpush.bf16.msra.mxu0 0
  %428 = vmatpush.bf16.msra.mxu0 0
  %429 = vmatpush.bf16.msra.mxu0 0
  %430 = vmatpush.bf16.msra.mxu0 0
  %431 = vmatpush.bf16.msra.mxu0 0
  %432 = vmatpush.bf16.msra.mxu0 0
  %433 = vmatpush.bf16.msra.mxu0 0
  %434 = vmatpush.bf16.msra.mxu0 %v425
  %435 = vmatmul.bf16.gmra.mxu0 %v422
  %v436 = vpop.f32.mrf.mxu0
  %v437 = vadd.f32 0.0, %v436
  %v438 = vpop.f32.mrf.mxu0
  %439 = vdwg.mxu0
  %v440 = vpack.c.bf16 %v418, %v418
  %v441 = vpack.c.bf16 %v437, %v437
  %v442 = vld [vmem:[%s6] sm:$0xff]
  %v443 = vld [vmem:[%s6 + $0x8] sm:$0xff]
  %v444 = vld [vmem:[%s6 + $0x10] sm:$0xff]
  %v445 = vld [vmem:[%s6 + $0x18] sm:$0xff]
  %v446 = vpack.c.bf16 %v443, %v442
  %v447 = vpack.c.bf16 %v445, %v444
  %v448 = vld [vmem:[%s7] sm:$0x1]
  %v450 = vperm.slane %v448, 0
  %v454 = vunpack.c.l.b16 %v440
  %v455 = vunpack.c.l.b16 %v441
  %v456 = vrot.slane %v455, 7
  %vm457 = vcmask 1041409
  %v458 = vsel %vm457, %v456, %v454
  %v459 = vpack.c.b16 %v458, %v458
  %vm460 = vcmask 261120
  %v462 = vsel %vm460, %v459, 0
  %464 = vmatpush.bf16.msra.mxu0 0
  %465 = vmatpush.bf16.msra.mxu0 0
  %466 = vmatpush.bf16.msra.mxu0 0
  %467 = vmatpush.bf16.msra.mxu0 0
  %468 = vmatpush.bf16.msra.mxu0 0
  %469 = vmatpush.bf16.msra.mxu0 0
  %470 = vmatpush.bf16.msra.mxu0 %v447
  %471 = vmatpush.bf16.msra.mxu0 %v446
  %472 = vmatmul.bf16.gmra.mxu0 %v462
  %v473 = vpop.f32.mrf.mxu0
  %v474 = vadd.f32 %v450, %v473
  %v475 = vpop.f32.mrf.mxu0
  %476 = vdwg.mxu0
  %v477 = vmul.f32 %v367, %v367
  %v478 = vsel %vm404, %v477, 0.0
  %479 = vadd.xlane.f32.xlu0 %v478
  %v480 = vpop.xlane.xlu0 %479
  %v481 = vadd.f32 %v480, 1e-12
  %v482 = vrsqrt.pop %v481
  %v483 = vmul.f32 %v482, %v481
  %v484 = vmul.f32 %v483, %v482
  %v485 = vmul.f32 0.5, %v484
  %v486 = vsub.f32 1.5, %v485
  %v487 = vmul.f32 %v482, %v486
  %vm488 = vweird.f32 %v481
  %vm489 = vweird.f32 %v482
  %vm490 = vmor %vm488, %vm489
  %v491 = vsel %vm490, %v482, %v487
  %v492 = vmul.f32 %v367, %v491
  %v493 = vmul.f32 %v474, %v474
  %vm494 = vcmask 1041408
  %v495 = vsel %vm494, %v493, 0.0
  %496 = vadd.xlane.f32.xlu0 %v495
  %v497 = vpop.xlane.xlu0 %496
  %v498 = vadd.f32 %v497, 1e-12
  %v499 = vrsqrt.pop %v498
  %v500 = vmul.f32 %v499, %v498
  %v501 = vmul.f32 %v500, %v499
  %v502 = vmul.f32 0.5, %v501
  %v503 = vsub.f32 1.5, %v502
  %v504 = vmul.f32 %v499, %v503
  %vm505 = vweird.f32 %v498
  %vm506 = vweird.f32 %v499
  %vm507 = vmor %vm505, %vm506
  %v508 = vsel %vm507, %v499, %v504
  %v509 = vmul.f32 %v474, %v508
  %v511 = vrot.slane %v509, 4
  %v513 = vsel %vm404, %v492, %v511
  %vm514 = vcmask 1045504
  %v515 = vsel %vm514, %v513, 0.0
  %s516 = sld [smem:[#allocation2]]
  %v517 = vstv %s516
  %v518 = vmul.f32 %v517, 1.442695
  %v519 = vpow.pop %v518
  %s520 = vtos %v519
  %v521 = vpack.c.bf16 %v515, %v515
  %v522 = vpack.c.bf16 0.0, %v515
  %v523 = vpack.c.bf16 0.0, 0.0
  %524 = vmatpush.bf16.xpose.msra.mxu0 %v523
  %525 = vmatpush.bf16.xpose.msra.mxu0 %v523
  %526 = vmatpush.bf16.xpose.msra.mxu0 %v523
  %527 = vmatpush.bf16.xpose.msra.mxu0 %v523
  %528 = vmatpush.bf16.xpose.msra.mxu0 %v523
  %529 = vmatpush.bf16.xpose.msra.mxu0 %v523
  %530 = vmatpush.bf16.xpose.msra.mxu0 %v523
  %531 = vmatpush.bf16.xpose.msra.mxu0 %v522
  %532 = vmatmul.bf16.gmra.mxu0 %v521
  %v533 = vpop.f32.mrf.mxu0
  %v534 = vadd.f32 0.0, %v533
  %v535 = vpop.f32.mrf.mxu0
  %536 = vdwg.mxu0
  %v537 = vstv %s520
  %v538 = vmul.f32 %v537, %v534
  %539 = vst [vmem:[%s8] sm:$0xff] %v538
  // Predicated region
  $region34: #{_forward_core.1} parent=0 // pred_check
    _
  $region35: #{_forward_core.1} parent=0 // pred_check_branch
    %541 = sbr.rel (0) target = $region37
  $region36: #{_forward_core.1} parent=0 // pred_region
    _
  $region37: #{_forward_core.1} parent=0 // pred_fallthru
    _
  // Predicated region
  $region38: #{_forward_core.1} parent=0 // pred_check
    _
  $region39: #{_forward_core.1} parent=0 // pred_check_branch
    %543 = sbr.rel (0) target = $region41
  $region40: #{_forward_core.1} parent=0 // pred_region
    _
  $region41: #{_forward_core.1} parent=0 // pred_fallthru
    _

</llo_original>
